<compile_context>
chip_gen: v5e
topology: v5e:2x2
jax: 0.10.0
libtpu: 0.0.40
codegen_flags: <defaults>
</compile_context>

<pallas_src>
import functools

import jax
import jax.numpy as jnp
from jax.experimental import pallas as pl
from jax.experimental.pallas import tpu as pltpu


def _round_up(x, m):
    return (x + m - 1) // m * m


def _cdiv(a, b):
    return (a + b - 1) // b


def _tpu_vmem_capacity_bytes():
    """Physical VMEM per TensorCore; conservative (v7x-sized) fallback if the query fails."""
    try:
        return int(pltpu.get_tpu_info().vmem_capacity_bytes)
    except Exception:
        return 64 << 20


@functools.lru_cache(maxsize=None)
def _single_buffer_weights_supported():
    """Probe whether BlockSpec(pipeline_mode=pl.Buffered(1)) lowers/runs on this jax/TPU."""
    try:
        def copy_kernel(x_ref, o_ref):
            o_ref[...] = x_ref[...]

        x = jnp.zeros((8, 128), jnp.float32)
        out = pl.pallas_call(
            copy_kernel,
            out_shape=jax.ShapeDtypeStruct((8, 128), jnp.float32),
            grid=(1,),
            in_specs=[pl.BlockSpec((8, 128), lambda i: (0, 0),
                                   pipeline_mode=pl.Buffered(1))],
            out_specs=pl.BlockSpec((8, 128), lambda i: (0, 0)),
        )(x)
        jax.block_until_ready(out)
        return True
    except Exception:
        return False


def _make_fused_mlp_kernel(num_layers):
    """Kernel computing relu(...relu(x@W0+b0)...@W_{L-1}+b_{L-1}) on one batch tile."""

    def kernel(x_ref, *refs):
        # refs = (w0, b0, w1, b1, ..., w_{L-1}, b_{L-1}, o_ref)
        o_ref = refs[-1]
        h = x_ref[...]
        for l in range(num_layers):
            w = refs[2 * l][...]
            b = refs[2 * l + 1][...]
            acc = jnp.dot(h.astype(w.dtype), w, preferred_element_type=jnp.float32)
            # bias + ReLU epilogue in f32 (cheap on VPU; also valid on v5e which lacks bf16 VPU)
            h = jnp.maximum(acc + b.astype(jnp.float32), 0.0)
        o_ref[...] = h.astype(o_ref.dtype)

    return kernel


def fused_mlp(x, weights_t, biases, *, out_dtype, tm_max, vmem_cap, single_buffer_weights):
    """relu-MLP over x: weights_t[l] is (d_l_pad, d_{l+1}_pad), biases[l] is (1, d_{l+1}_pad).

    Returns the batch-padded, lane-padded output (m_pad, n_out_pad); caller slices valid part.
    """
    m, k = x.shape
    num_layers = len(weights_t)
    assert num_layers == len(biases) and num_layers >= 1
    n_out = weights_t[-1].shape[1]                      # already a multiple of 128
    out_itemsize = jnp.dtype(out_dtype).itemsize

    # --- VMEM footprint model (bytes) for a given batch tile tm_.
    param_bytes = sum(w.size * w.dtype.itemsize + b.size * b.dtype.itemsize
                      for w, b in zip(weights_t, biases))
    wbuf = 1 if single_buffer_weights else 2            # weight/bias buffer count

    def footprint(tm_):
        f = wbuf * param_bytes                                   # resident params
        f += 2 * tm_ * k * x.dtype.itemsize                      # double-buffered input tiles
        f += 2 * tm_ * n_out * out_itemsize                      # double-buffered output tiles
        f += sum(tm_ * w.shape[1] * 4 for w in weights_t)        # f32 layer intermediates
        return f

    budget = int(vmem_cap * 0.9)

    # --- Balanced batch tiling (minimal padding waste); >=2 tiles when m >= 16 so v7x can
    #     shard the "parallel" batch axis across both TensorCores.
    n_tiles = max(_cdiv(m, tm_max), 2 if m >= 16 else 1)
    tm = _round_up(_cdiv(m, n_tiles), 8)
    while footprint(tm) > budget and tm > 8:                     # shrink tile if VMEM-bound
        tm = max(8, _round_up(tm // 2, 8))
    n_tiles = max(n_tiles, _cdiv(m, tm))
    tm = _round_up(_cdiv(m, n_tiles), 8)                         # rebalance (never grows tm)
    m_pad = n_tiles * tm

    if m_pad != m:
        # Padded batch rows compute relu(bias) garbage; they are sliced off by the caller and
        # must never be consumed directly (e.g. if a downstream op gets fused in later).
        x = jnp.pad(x, ((0, m_pad - m), (0, 0)))

    wb_kwargs = {}
    if single_buffer_weights:
        wb_kwargs = dict(pipeline_mode=pl.Buffered(1))           # grid-invariant -> one buffer

    in_specs = [pl.BlockSpec((tm, k), lambda i: (i, 0))]         # batch tile of activations
    for w, b in zip(weights_t, biases):
        kin, kout = w.shape
        # Resident (grid-invariant) weight / bias blocks, fetched once.
        in_specs.append(pl.BlockSpec((kin, kout), lambda i: (0, 0), **wb_kwargs))
        in_specs.append(pl.BlockSpec((1, kout), lambda i: (0, 0), **wb_kwargs))

    flat_params = [a for wb in zip(weights_t, biases) for a in wb]

    # Advisory cost estimate so XLA can overlap this custom call with the surrounding graph.
    flops = 2 * m_pad * sum(w.shape[0] * w.shape[1] for w in weights_t)
    bytes_accessed = int(x.size * x.dtype.itemsize + param_bytes + m_pad * n_out * out_itemsize)
    cost = pl.CostEstimate(flops=int(flops), transcendentals=0, bytes_accessed=bytes_accessed)

    # Explicit scoped-VMEM cap, sized from the footprint model with headroom, clamped to physical.
    vmem_limit = int(min(max(2 * footprint(tm) + (4 << 20), 32 << 20), vmem_cap))

    out = pl.pallas_call(
        _make_fused_mlp_kernel(num_layers),
        out_shape=jax.ShapeDtypeStruct((m_pad, n_out), out_dtype),
        grid_spec=pltpu.PrefetchScalarGridSpec(
            num_scalar_prefetch=0,
            grid=(n_tiles,),
            in_specs=in_specs,
            out_specs=pl.BlockSpec((tm, n_out), lambda i: (i, 0)),   # lane-dense store
        ),
        compiler_params=pltpu.CompilerParams(
            dimension_semantics=("parallel",),
            vmem_limit_bytes=vmem_limit,
        ),
        cost_estimate=cost,
    )(x, *flat_params)

    return out


@functools.partial(jax.jit, static_argnames=("out_features", "out_dtype", "tm_max",
                                             "vmem_cap", "single_buffer_weights"))
def dnn_forward(x, weights_t, biases, *, out_features, out_dtype, tm_max, vmem_cap,
                single_buffer_weights):
    m = x.shape[0]
    y = fused_mlp(x, weights_t, biases, out_dtype=out_dtype, tm_max=tm_max,
                  vmem_cap=vmem_cap, single_buffer_weights=single_buffer_weights)
    if y.shape[0] == m and y.shape[1] == out_features:
        return y
    # Single slice: drops batch-padding rows AND padded output columns in one XLA copy.
    # TODO(synk): fuse the downstream DeepFM consumer (final linear + sigmoid) into this kernel
    # to avoid writing the 128-padded output columns back to HBM at all.
    return y[:m, :out_features]


class DNNPallas:
    """Mirror of the PyTorch DNN module: stack of Linear(+bias) layers, ReLU after each."""

    def __init__(self, hidden_units, key, dtype=jnp.float32, compute_dtype=None):
        self.hidden_units = list(hidden_units)
        self.out_features = hidden_units[-1]
        # bf16 compute is worthwhile on ALL generations (v5e included): bf16 MXU + f32 epilogue.
        self.compute_dtype = jnp.dtype(compute_dtype) if compute_dtype is not None else jnp.dtype(dtype)

        # Generation-aware budgets (Python-level, static under jit).
        self.vmem_cap = _tpu_vmem_capacity_bytes()
        # v5e/v6e: 128 MiB physical -> big batch tiles; v7x: 64 MiB -> cap tm at 512.
        self.tm_max = 1024 if self.vmem_cap >= (100 << 20) else 512
        self.single_buffer_weights = _single_buffer_weights_supported()

        # Raw params in PyTorch layout (out, in) for the pure-JAX reference.
        raw = []
        for fin, fout in zip(hidden_units[:-1], hidden_units[1:]):
            key, kw, kb = jax.random.split(key, 3)
            bound = 1.0 / (fin ** 0.5)   # nn.Linear default U(-1/sqrt(fin), 1/sqrt(fin))
            w = jax.random.uniform(kw, (fout, fin), dtype, minval=-bound, maxval=bound)
            b = jax.random.uniform(kb, (fout,), dtype, minval=-bound, maxval=bound)
            raw.append((w, b))
        self.raw_params = raw

        # Pre-transpose + zero-pad ONCE at init (not per forward): out dims -> multiple of 128.
        wts, bs = [], []
        in_dim = hidden_units[0]                       # input feature dim left unpadded
        for (w, b) in raw:
            fout, fin = w.shape
            out_pad = _round_up(fout, 128)
            wt = jnp.zeros((in_dim, out_pad), self.compute_dtype)
            wt = wt.at[:fin, :fout].set(w.T.astype(self.compute_dtype))
            bp = jnp.zeros((1, out_pad), self.compute_dtype)
            bp = bp.at[0, :fout].set(b.astype(self.compute_dtype))
            wts.append(wt)
            bs.append(bp)
            in_dim = out_pad
        self.weights_t = tuple(wts)
        self.biases = tuple(bs)

    def __call__(self, x):
        out_dtype = x.dtype
        # Note: in the bf16 path inputs are cast to bf16 too (tolerance-gated vs f32 reference).
        return dnn_forward(
            x.astype(self.compute_dtype),
            self.weights_t,
            self.biases,
            out_features=self.out_features,
            out_dtype=out_dtype,
            tm_max=self.tm_max,
            vmem_cap=self.vmem_cap,
            single_buffer_weights=self.single_buffer_weights,
        )

    def reference(self, x):
        """Pure-JAX reference of the PyTorch forward for verification."""
        h = x
        for w, b in self.raw_params:
            h = jnp.maximum(h @ w.T + b, 0.0)
        return h


if __name__ == "__main__":
    key = jax.random.PRNGKey(0)
    kx, kparams = jax.random.split(key)

    batch = 128
    hidden_units = [32, 64, 16]          # DNN(hidden_units) -> Linear(32,64), Linear(64,16)

    x = jax.random.normal(kx, (batch, hidden_units[0]), jnp.float32)

    # f32 end-to-end path (exact vs reference).
    model = DNNPallas(hidden_units, kparams)
    out = jax.block_until_ready(model(x))
    ref = model.reference(x)
    assert out.shape == (batch, hidden_units[-1])
    assert jnp.allclose(out, ref, atol=1e-5, rtol=1e-5), "f32 mismatch vs reference"

    # bf16 compute path (valid on v5e/v6e/v7x): bf16 inputs/weights, f32 accumulate + epilogue.
    model_bf16 = DNNPallas(hidden_units, kparams, compute_dtype=jnp.bfloat16)
    out_bf16 = jax.block_until_ready(model_bf16(x))
    assert out_bf16.shape == (batch, hidden_units[-1])
    assert jnp.allclose(out_bf16, ref, atol=5e-2, rtol=5e-2), "bf16 mismatch vs reference"

    # Batch not divisible by the tile -> exercises balanced tiling + batch-padding path.
    x_odd = jax.random.normal(kx, (batch + 3, hidden_units[0]), jnp.float32)
    out_odd = jax.block_until_ready(model(x_odd))
    ref_odd = model.reference(x_odd)
    assert out_odd.shape == (batch + 3, hidden_units[-1])
    assert jnp.allclose(out_odd, ref_odd, atol=1e-5, rtol=1e-5), "odd-batch mismatch vs reference"

    # Tiny batch (single tile) path.
    x_small = jax.random.normal(kx, (8, hidden_units[0]), jnp.float32)
    out_small = jax.block_until_ready(model(x_small))
    assert jnp.allclose(out_small, model.reference(x_small), atol=1e-5, rtol=1e-5), \
        "small-batch mismatch vs reference"

    print("KERNEL_OK")
</pallas_src>

<mosaic_0001>
module attributes {stable_mosaic.version = 11 : i64} {
  func.func @copy_kernel(%arg0: i32, %arg1: memref<8x128xf32, #tpu.memory_space<vmem>>, %arg2: memref<8x128xf32, #tpu.memory_space<vmem>>) attributes {dimension_semantics = [#tpu.dimension_semantics<arbitrary>], iteration_bounds = array<i64: 1>, scalar_prefetch = 0 : i64, scratch_operands = 0 : i64, tpu.core_type = #tpu.core_type<tc>, window_params = [{pipeline_mode = #tpu.pipeline_mode<synchronous>, transform_indices = @transform_0, window_bounds = array<i64: 8, 128>}, {pipeline_mode = #tpu.pipeline_mode<synchronous>, transform_indices = @transform_1, window_bounds = array<i64: 8, 128>}]} {
    %c0 = arith.constant 0 : index
    %c0_0 = arith.constant 0 : index
    %0 = vector.load %arg1[%c0, %c0_0] : memref<8x128xf32, #tpu.memory_space<vmem>>, vector<8x128xf32>
    %c0_1 = arith.constant 0 : index
    %c0_2 = arith.constant 0 : index
    %1 = vector.load %arg2[%c0_1, %c0_2] : memref<8x128xf32, #tpu.memory_space<vmem>>, vector<8x128xf32>
    tpu.vector_store %arg2[%c0_1, %c0_2], %0 {strides = array<i32>} : memref<8x128xf32, #tpu.memory_space<vmem>>, vector<8x128xf32>,
    return
  }
  func.func @transform_0(%arg0: i32) -> (i32, i32) {
    %c0_i32 = arith.constant 0 : i32
    %c0_i32_0 = arith.constant 0 : i32
    %c0_i32_1 = arith.constant 0 : i32
    return %c0_i32, %c0_i32_0 : i32, i32
  }
  func.func @transform_1(%arg0: i32) -> (i32, i32) {
    %c0_i32 = arith.constant 0 : i32
    %c0_i32_0 = arith.constant 0 : i32
    %c0_i32_1 = arith.constant 0 : i32
    return %c0_i32, %c0_i32_0 : i32, i32
  }
}

module attributes {stable_mosaic.version = 11 : i64} {
  func.func @kernel(%arg0: i32, %arg1: memref<64x32xf32, #tpu.memory_space<vmem>>, %arg2: memref<32x128xf32, #tpu.memory_space<vmem>>, %arg3: memref<1x128xf32, #tpu.memory_space<vmem>>, %arg4: memref<128x128xf32, #tpu.memory_space<vmem>>, %arg5: memref<1x128xf32, #tpu.memory_space<vmem>>, %arg6: memref<64x128xf32, #tpu.memory_space<vmem>>) attributes {dimension_semantics = [#tpu.dimension_semantics<parallel>], iteration_bounds = array<i64: 2>, scalar_prefetch = 0 : i64, scratch_operands = 0 : i64, tpu.core_type = #tpu.core_type<tc>, window_params = [{transform_indices = @transform_0, window_bounds = array<i64: 64, 32>}, {pipeline_mode = #tpu.pipeline_mode<synchronous>, transform_indices = @transform_1, window_bounds = array<i64: 32, 128>}, {pipeline_mode = #tpu.pipeline_mode<synchronous>, transform_indices = @transform_2, window_bounds = array<i64: 1, 128>}, {pipeline_mode = #tpu.pipeline_mode<synchronous>, transform_indices = @transform_3, window_bounds = array<i64: 128, 128>}, {pipeline_mode = #tpu.pipeline_mode<synchronous>, transform_indices = @transform_4, window_bounds = array<i64: 1, 128>}, {transform_indices = @transform_5, window_bounds = array<i64: 64, 128>}]} {
    %c0 = arith.constant 0 : index
    %c0_0 = arith.constant 0 : index
    %0 = vector.load %arg1[%c0, %c0_0] : memref<64x32xf32, #tpu.memory_space<vmem>>, vector<64x32xf32>
    %c0_1 = arith.constant 0 : index
    %c0_2 = arith.constant 0 : index
    %1 = vector.load %arg2[%c0_1, %c0_2] : memref<32x128xf32, #tpu.memory_space<vmem>>, vector<32x128xf32>
    %c0_3 = arith.constant 0 : index
    %c0_4 = arith.constant 0 : index
    %2 = vector.load %arg3[%c0_3, %c0_4] : memref<1x128xf32, #tpu.memory_space<vmem>>, vector<1x128xf32>
    %cst = arith.constant dense<0.000000e+00> : vector<64x128xf32>
    %3 = tpu.matmul %0, %1, %cst {dimension_numbers = #tpu.dot_dimension_numbers<[1], [0], [0], [1], [0, 0, 1, 1], [], []>} : vector<64x32xf32>, vector<32x128xf32>, vector<64x128xf32> -> vector<64x128xf32>
    %4 = vector.broadcast %2 : vector<1x128xf32> to vector<64x128xf32>
    %5 = arith.addf %3, %4 : vector<64x128xf32>
    %cst_5 = arith.constant 0.000000e+00 : f32
    %6 = vector.broadcast %cst_5 : f32 to vector<64x128xf32>
    %7 = arith.maximumf %5, %6 : vector<64x128xf32>
    %c0_6 = arith.constant 0 : index
    %c0_7 = arith.constant 0 : index
    %8 = vector.load %arg4[%c0_6, %c0_7] : memref<128x128xf32, #tpu.memory_space<vmem>>, vector<128x128xf32>
    %c0_8 = arith.constant 0 : index
    %c0_9 = arith.constant 0 : index
    %9 = vector.load %arg5[%c0_8, %c0_9] : memref<1x128xf32, #tpu.memory_space<vmem>>, vector<1x128xf32>
    %cst_10 = arith.constant dense<0.000000e+00> : vector<64x128xf32>
    %10 = tpu.matmul %7, %8, %cst_10 {dimension_numbers = #tpu.dot_dimension_numbers<[1], [0], [0], [1], [0, 0, 1, 1], [], []>} : vector<64x128xf32>, vector<128x128xf32>, vector<64x128xf32> -> vector<64x128xf32>
    %11 = vector.broadcast %9 : vector<1x128xf32> to vector<64x128xf32>
    %12 = arith.addf %10, %11 : vector<64x128xf32>
    %cst_11 = arith.constant 0.000000e+00 : f32
    %13 = vector.broadcast %cst_11 : f32 to vector<64x128xf32>
    %14 = arith.maximumf %12, %13 : vector<64x128xf32>
    %c0_12 = arith.constant 0 : index
    %c0_13 = arith.constant 0 : index
    %15 = vector.load %arg6[%c0_12, %c0_13] : memref<64x128xf32, #tpu.memory_space<vmem>>, vector<64x128xf32>
    tpu.vector_store %arg6[%c0_12, %c0_13], %14 {strides = array<i32>} : memref<64x128xf32, #tpu.memory_space<vmem>>, vector<64x128xf32>,
    return
  }
  func.func @transform_0(%arg0: i32) -> (i32, i32) {
    %c0_i32 = arith.constant 0 : i32
    %c0_i32_0 = arith.constant 0 : i32
    return %arg0, %c0_i32 : i32, i32
  }
  func.func @transform_1(%arg0: i32) -> (i32, i32) {
    %c0_i32 = arith.constant 0 : i32
    %c0_i32_0 = arith.constant 0 : i32
    %c0_i32_1 = arith.constant 0 : i32
    return %c0_i32, %c0_i32_0 : i32, i32
  }
  func.func @transform_2(%arg0: i32) -> (i32, i32) {
    %c0_i32 = arith.constant 0 : i32
    %c0_i32_0 = arith.constant 0 : i32
    %c0_i32_1 = arith.constant 0 : i32
    return %c0_i32, %c0_i32_0 : i32, i32
  }
  func.func @transform_3(%arg0: i32) -> (i32, i32) {
    %c0_i32 = arith.constant 0 : i32
    %c0_i32_0 = arith.constant 0 : i32
    %c0_i32_1 = arith.constant 0 : i32
    return %c0_i32, %c0_i32_0 : i32, i32
  }
  func.func @transform_4(%arg0: i32) -> (i32, i32) {
    %c0_i32 = arith.constant 0 : i32
    %c0_i32_0 = arith.constant 0 : i32
    %c0_i32_1 = arith.constant 0 : i32
    return %c0_i32, %c0_i32_0 : i32, i32
  }
  func.func @transform_5(%arg0: i32) -> (i32, i32) {
    %c0_i32 = arith.constant 0 : i32
    %c0_i32_0 = arith.constant 0 : i32
    return %arg0, %c0_i32 : i32, i32
  }
}

</mosaic_0001>

<llo_original>
// kernel: tpu_custom_call.1
$region0: #{tpu_custom_call.1}
  #allocation0 [shape = 'u32[]', space=smem, size = 0x4, offset = 0x4, fixed_abs, tag = 'smem constant byte address 0x4 - core index']
  #allocation1 [shape = 'u32[72,128]{1,0:T(1,128)}', space=vmem, size = 0x9000, scoped, tag = 'internal scratch']
  %s0 = inlined_call_operand.hbm [shape: f32[8,128], index: 0, kind: input, shape index: {}]
  %s1 = inlined_call_operand.hbm [shape: f32[8,128], index: 1, kind: output, shape index: {}]
  %s2 = sld [smem:[#allocation0]]
  $region18: #{tpu_custom_call.1} parent=0
    _
  %s4 = ssub.s32 1, %s2
  %s5 = scalar_select 0, %s4, %s2
  $region1: #{tpu_custom_call.1} parent=0
    #allocation2 [shape = 'u8[4096]{0}', space=vmem, size = 0x1000, scoped, tag = 'input window, operand 0, single buffered']
    #allocation3 [shape = 's32[1]{0}', space=sflag, size = 0x4, scoped, tag = 'scoped memory for tpu_custom_call.1']
    #allocation4 [shape = 's32[1]{0}', space=sflag, size = 0x4, scoped, tag = 'scoped memory for tpu_custom_call.1']
    #allocation5 [shape = 'u8[4096]{0}', space=vmem, size = 0x1000, scoped, tag = 'output window, operand 0, single buffered']
    %6 = vsyncpa [#allocation3], 0
    %7 = vsyncpa [#allocation4], 0
    // Predicated region
    $region2: #{tpu_custom_call.1} parent=1 // pred_check
      _
    $region3: #{tpu_custom_call.1} parent=1 // pred_check_branch
      %9 = sbr.rel (0) target = $region5
    $region4: #{tpu_custom_call.1} parent=1 // pred_region
      %11 = vsyncadd [#allocation3], 0
      %s13 = sshll.u32 %s0, 4
      %s14 = int_to_ptr.hbm [resolvable:$true] %s13
      %s15 = sshll.u32 [#allocation2], 4
      %s16 = int_to_ptr.vmem [resolvable:$true] %s15
      %18 = dma.hbm_to_vmem [thread:$0]  %s14, 128, %s16, [#allocation3]
    $region5: #{tpu_custom_call.1} parent=1 // pred_fallthru
      _
    // Predicated region
    $region6: #{tpu_custom_call.1} parent=1 // pred_check
      _
    $region7: #{tpu_custom_call.1} parent=1 // pred_check_branch
      %20 = sbr.rel (0) target = $region9
    $region8: #{tpu_custom_call.1} parent=1 // pred_region
      %22 = dma.done [#allocation3], 128
    $region9: #{tpu_custom_call.1} parent=1 // pred_fallthru
      _
    %v23 = vld [vmem:[#allocation2] sm:$0xff]
    %24 = vst [vmem:[#allocation5] sm:$0xff] %v23
    // Predicated region
    $region10: #{tpu_custom_call.1} parent=1 // pred_check
      _
    $region11: #{tpu_custom_call.1} parent=1 // pred_check_branch
      %26 = sbr.rel (0) target = $region13
    $region12: #{tpu_custom_call.1} parent=1 // pred_region
      %28 = vsyncadd [#allocation4], 0
      %s30 = sshll.u32 [#allocation5], 4
      %s31 = int_to_ptr.vmem [resolvable:$true] %s30
      %s32 = sshll.u32 %s1, 4
      %s33 = int_to_ptr.hbm [resolvable:$true] %s32
      %35 = dma.vmem_to_hbm [thread:$0]  %s31, 128, %s33, [#allocation4]
    $region13: #{tpu_custom_call.1} parent=1 // pred_fallthru
      _
    // Predicated region
    $region14: #{tpu_custom_call.1} parent=1 // pred_check
      _
    $region15: #{tpu_custom_call.1} parent=1 // pred_check_branch
      %37 = sbr.rel (0) target = $region17
    $region16: #{tpu_custom_call.1} parent=1 // pred_region
      %39 = dma.done [#allocation4], 128
    $region17: #{tpu_custom_call.1} parent=1 // pred_fallthru
      _
    %40 = vsyncpa [#allocation3], 1
    %41 = vsyncpa [#allocation4], 1

// kernel: dnn_forward.1
$region0: #{dnn_forward.1}
  #allocation0 [shape = 'u32[]', space=smem, size = 0x4, offset = 0x4, fixed_abs, tag = 'smem constant byte address 0x4 - core index']
  #allocation1 [shape = 'u32[72,128]{1,0:T(1,128)}', space=vmem, size = 0x9000, scoped, tag = 'internal scratch']
  %s0 = inlined_call_operand.vmem [shape: f32[128,32], index: 0, kind: input, shape index: {}]
  %s1 = inlined_call_operand.vmem [shape: f32[32,128], index: 1, kind: input, shape index: {}]
  %s2 = inlined_call_operand.vmem [shape: f32[1,128], index: 2, kind: input, shape index: {}]
  %s3 = inlined_call_operand.vmem [shape: f32[128,128], index: 3, kind: input, shape index: {}]
  %s4 = inlined_call_operand.vmem [shape: f32[1,128], index: 4, kind: input, shape index: {}]
  %s5 = inlined_call_operand.vmem [shape: f32[128,128], index: 5, kind: output, shape index: {}]
  %s6 = sld [smem:[#allocation0]]
  $region53: #{dnn_forward.1} parent=0
    _
  %s8 = ssub.s32 1, %s6
  %s9 = scalar_select 0, %s8, %s6
  loop: start=0, step=1, limit=4
  $region2: #{dnn_forward.1} parent=0 // loop_pre_header
    _
  $region3: #{dnn_forward.1} parent=0 // loop_header
    %s11 = sphi 0, %s15
    %p12 = scmp.ge.s32.totalorder %s11, 4
    %s21 = sphi 0, %s23
    %s24 = sphi 0, %s21
    %s25 = sphi 0, %s24
    %s41 = sphi 0, %s25
    %s45 = sphi 0, %s45
    %s47 = sphi 0, %s45
    %s48 = sphi 0, %s47
    %s62 = sphi 0, %s48
    %s66 = sphi 0, %s66
    %s68 = sphi 0, %s66
    %s69 = sphi 0, %s68
    %s83 = sphi 0, %s69
    %s87 = sphi 0, %s87
    %s89 = sphi 0, %s87
    %s90 = sphi 0, %s89
    %s104 = sphi 0, %s90
    %s108 = sphi 0, %s108
    %s110 = sphi 0, %s108
    %s111 = sphi 0, %s110
    %s125 = sphi 0, %s111
    %s131 = sphi 0, %s133
    %s134 = sphi 0, %s131
    %s135 = sphi 0, %s134
    %s151 = sphi 0, %s135
  $region4: #{dnn_forward.1} parent=0 // loop_header_branch
    %14 = sbr.rel (%p12) target = $region8
  $region5: #{dnn_forward.1} parent=0 // loop_body
    %s16 = ssub.s32 %s11, 1
    %s17 = ssub.s32 %s11, 2
    %s18 = sadd.s32 %s11, 1
    %s19 = ssub.s32 %s11, %s18
    %p20 = scmp.eq.s32.totalorder %s19, 0
    %s22 = sadd.s32 %s21, 1
    %s23 = scalar_select %p20, %s21, %s22
    %p26 = pneg %p20
    %p27 = scmp.eq.s32.totalorder %s11, 1
    %p28 = por %p26, %p27
    %p29 = scmp.ne.s32.totalorder %s21, %s24
    %p30 = scmp.eq.s32.totalorder %s11, 0
    %p31 = por %p29, %p30
    %p32 = scmp.ne.s32.totalorder %s21, %s24
    %p33 = scmp.eq.s32.totalorder %s16, 1
    %p34 = por %p32, %p33
    %p35 = scmp.ne.s32.totalorder %s24, %s25
    %p36 = scmp.eq.s32.totalorder %s16, 0
    %p37 = por %p35, %p36
    %p38 = scmp.ne.s32.totalorder %s24, %s25
    %p39 = scmp.eq.s32.totalorder %s17, 1
    %p40 = por %p38, %p39
    %p42 = scmp.ne.s32.totalorder %s25, %s41
    %p43 = scmp.eq.s32.totalorder %s17, 0
    %p44 = por %p42, %p43
    %s46 = sadd.s32 %s45, 1
    %p49 = scmp.eq.s32.totalorder %s11, 1
    %p50 = scmp.ne.s32.totalorder %s45, %s47
    %p51 = scmp.eq.s32.totalorder %s11, 0
    %p52 = por %p50, %p51
    %p53 = scmp.ne.s32.totalorder %s45, %s47
    %p54 = scmp.eq.s32.totalorder %s16, 1
    %p55 = por %p53, %p54
    %p56 = scmp.ne.s32.totalorder %s47, %s48
    %p57 = scmp.eq.s32.totalorder %s16, 0
    %p58 = por %p56, %p57
    %p59 = scmp.ne.s32.totalorder %s47, %s48
    %p60 = scmp.eq.s32.totalorder %s17, 1
    %p61 = por %p59, %p60
    %p63 = scmp.ne.s32.totalorder %s48, %s62
    %p64 = scmp.eq.s32.totalorder %s17, 0
    %p65 = por %p63, %p64
    %s67 = sadd.s32 %s66, 1
    %p70 = scmp.eq.s32.totalorder %s11, 1
    %p71 = scmp.ne.s32.totalorder %s66, %s68
    %p72 = scmp.eq.s32.totalorder %s11, 0
    %p73 = por %p71, %p72
    %p74 = scmp.ne.s32.totalorder %s66, %s68
    %p75 = scmp.eq.s32.totalorder %s16, 1
    %p76 = por %p74, %p75
    %p77 = scmp.ne.s32.totalorder %s68, %s69
    %p78 = scmp.eq.s32.totalorder %s16, 0
    %p79 = por %p77, %p78
    %p80 = scmp.ne.s32.totalorder %s68, %s69
    %p81 = scmp.eq.s32.totalorder %s17, 1
    %p82 = por %p80, %p81
    %p84 = scmp.ne.s32.totalorder %s69, %s83
    %p85 = scmp.eq.s32.totalorder %s17, 0
    %p86 = por %p84, %p85
    %s88 = sadd.s32 %s87, 1
    %p91 = scmp.eq.s32.totalorder %s11, 1
    %p92 = scmp.ne.s32.totalorder %s87, %s89
    %p93 = scmp.eq.s32.totalorder %s11, 0
    %p94 = por %p92, %p93
    %p95 = scmp.ne.s32.totalorder %s87, %s89
    %p96 = scmp.eq.s32.totalorder %s16, 1
    %p97 = por %p95, %p96
    %p98 = scmp.ne.s32.totalorder %s89, %s90
    %p99 = scmp.eq.s32.totalorder %s16, 0
    %p100 = por %p98, %p99
    %p101 = scmp.ne.s32.totalorder %s89, %s90
    %p102 = scmp.eq.s32.totalorder %s17, 1
    %p103 = por %p101, %p102
    %p105 = scmp.ne.s32.totalorder %s90, %s104
    %p106 = scmp.eq.s32.totalorder %s17, 0
    %p107 = por %p105, %p106
    %s109 = sadd.s32 %s108, 1
    %p112 = scmp.eq.s32.totalorder %s11, 1
    %p113 = scmp.ne.s32.totalorder %s108, %s110
    %p114 = scmp.eq.s32.totalorder %s11, 0
    %p115 = por %p113, %p114
    %p116 = scmp.ne.s32.totalorder %s108, %s110
    %p117 = scmp.eq.s32.totalorder %s16, 1
    %p118 = por %p116, %p117
    %p119 = scmp.ne.s32.totalorder %s110, %s111
    %p120 = scmp.eq.s32.totalorder %s16, 0
    %p121 = por %p119, %p120
    %p122 = scmp.ne.s32.totalorder %s110, %s111
    %p123 = scmp.eq.s32.totalorder %s17, 1
    %p124 = por %p122, %p123
    %p126 = scmp.ne.s32.totalorder %s111, %s125
    %p127 = scmp.eq.s32.totalorder %s17, 0
    %p128 = por %p126, %p127
    %s129 = ssub.s32 %s11, %s18
    %p130 = scmp.eq.s32.totalorder %s129, 0
    %s132 = sadd.s32 %s131, 1
    %s133 = scalar_select %p130, %s131, %s132
    %p136 = pneg %p130
    %p137 = scmp.eq.s32.totalorder %s11, 1
    %p138 = por %p136, %p137
    %p139 = scmp.ne.s32.totalorder %s131, %s134
    %p140 = scmp.eq.s32.totalorder %s11, 0
    %p141 = por %p139, %p140
    %p142 = scmp.ne.s32.totalorder %s131, %s134
    %p143 = scmp.eq.s32.totalorder %s16, 1
    %p144 = por %p142, %p143
    %p145 = scmp.ne.s32.totalorder %s134, %s135
    %p146 = scmp.eq.s32.totalorder %s16, 0
    %p147 = por %p145, %p146
    %p148 = scmp.ne.s32.totalorder %s134, %s135
    %p149 = scmp.eq.s32.totalorder %s17, 1
    %p150 = por %p148, %p149
    %p152 = scmp.ne.s32.totalorder %s135, %s151
    %p153 = scmp.eq.s32.totalorder %s17, 0
    %p154 = por %p152, %p153
    %p155 = scmp.le.s32.totalorder 1, %s11
    %p156 = scmp.lt.s32.totalorder %s11, 3
    %p157 = pnand %p155, %p156
    %p158 = pneg %p157
    // Predicated region
    $region9: #{dnn_forward.1} parent=5 // pred_check
      _
    $region10: #{dnn_forward.1} parent=5 // pred_check_branch
      %160 = sbr.rel (%p157) target = $region12
    $region11: #{dnn_forward.1} parent=5 // pred_region
      %s161 = ssub.s32 %s11, 1
      // Predicated region
      $region13: #{dnn_forward.1} parent=11 // pred_check
        %p162 = pneg %p58
      $region14: #{dnn_forward.1} parent=11 // pred_check_branch
        %164 = sbr.rel (%p162) target = $region16
      $region15: #{dnn_forward.1} parent=11 // pred_region
        _
      $region16: #{dnn_forward.1} parent=11 // pred_fallthru
        _
      // Predicated region
      $region17: #{dnn_forward.1} parent=11 // pred_check
        %p165 = pneg %p79
      $region18: #{dnn_forward.1} parent=11 // pred_check_branch
        %167 = sbr.rel (%p165) target = $region20
      $region19: #{dnn_forward.1} parent=11 // pred_region
        _
      $region20: #{dnn_forward.1} parent=11 // pred_fallthru
        _
      // Predicated region
      $region21: #{dnn_forward.1} parent=11 // pred_check
        %p168 = pneg %p100
      $region22: #{dnn_forward.1} parent=11 // pred_check_branch
        %170 = sbr.rel (%p168) target = $region24
      $region23: #{dnn_forward.1} parent=11 // pred_region
        _
      $region24: #{dnn_forward.1} parent=11 // pred_fallthru
        _
      // Predicated region
      $region25: #{dnn_forward.1} parent=11 // pred_check
        %p171 = pneg %p121
      $region26: #{dnn_forward.1} parent=11 // pred_check_branch
        %173 = sbr.rel (%p171) target = $region28
      $region27: #{dnn_forward.1} parent=11 // pred_region
        _
      $region28: #{dnn_forward.1} parent=11 // pred_fallthru
        _
    $region12: #{dnn_forward.1} parent=5 // pred_fallthru
      _
    %p174 = scmp.lt.s32.totalorder %s11, 2
    // Predicated region
    $region29: #{dnn_forward.1} parent=5 // pred_check
      %p175 = pneg %p174
    $region30: #{dnn_forward.1} parent=5 // pred_check_branch
      %177 = sbr.rel (%p175) target = $region32
    $region31: #{dnn_forward.1} parent=5 // pred_region
      // Predicated region
      $region33: #{dnn_forward.1} parent=31 // pred_check
        %p178 = pneg %p31
      $region34: #{dnn_forward.1} parent=31 // pred_check_branch
        %180 = sbr.rel (%p178) target = $region36
      $region35: #{dnn_forward.1} parent=31 // pred_region
        %s181 = smul.u32 8, %s11
        %p182 = scmp.lt.s32.totalorder %s181, 15
        %s183 = scalar_select %p182, %s181, 15
        %s184 = smul.addr %s183, 8
        %s185 = scalar_lea.vmem %s0, %s184
        %s186 = smul.u32 8, %s11
      $region36: #{dnn_forward.1} parent=31 // pred_fallthru
        _
    $region32: #{dnn_forward.1} parent=5 // pred_fallthru
      _
    %p187 = scmp.le.s32.totalorder 1, %s11
    %p188 = scmp.lt.s32.totalorder %s11, 3
    %p189 = pnand %p187, %p188
    %p190 = pneg %p189
    // Predicated region
    $region37: #{dnn_forward.1} parent=5 // pred_check
      _
    $region38: #{dnn_forward.1} parent=5 // pred_check_branch
      %192 = sbr.rel (%p189) target = $region40
    $region39: #{dnn_forward.1} parent=5 // pred_region
      %s193 = ssub.s32 %s11, 1
      %s194 = smul.u32 8, %s16
      %p195 = scmp.lt.s32.totalorder %s194, 15
      %s196 = scalar_select %p195, %s194, 15
      %s197 = smul.addr %s196, 8
      %s198 = scalar_lea.vmem %s0, %s197
      %p199 = pneg %p37
      %p200 = pneg %p34
      %p201 = pneg %p58
      %p202 = pneg %p55
      %p203 = pneg %p79
      %p204 = pneg %p76
      %p205 = pneg %p100
      %p206 = pneg %p97
      %p207 = pneg %p121
      %p208 = pneg %p118
      %p209 = pneg %p147
      %p210 = pneg %p144
      %s211 = smul.u32 8, %s16
      %p212 = scmp.lt.s32.totalorder %s211, 15
      %s213 = scalar_select %p212, %s211, 15
      %s214 = smul.addr %s213, 8
      %s215 = scalar_lea.vmem %s5, %s214
      %s216 = smul.u32 8, %s16
      %p217 = scmp.lt.s32.totalorder %s216, 15
      %s218 = scalar_select %p217, %s216, 15
      %s219 = smul.addr %s218, 8
      %s220 = scalar_lea.vmem %s0, %s219
      %s221 = smul.u32 8, %s16
      %s222 = smul.u32 8, %s16
      %p223 = scmp.lt.s32.totalorder %s222, 15
      %s224 = scalar_select %p223, %s222, 15
      %s225 = smul.addr %s224, 8
      %s226 = scalar_lea.vmem %s5, %s225
      %s227 = smul.u32 8, %s16
      %v228 = vld [vmem:[%s220] sm:$0xff]
      %v229 = vld [vmem:[%s220 + $0x8] sm:$0xff]
      %v230 = vld [vmem:[%s220 + $0x10] sm:$0xff]
      %v231 = vld [vmem:[%s220 + $0x18] sm:$0xff]
      %v232 = vld [vmem:[%s220 + $0x20] sm:$0xff]
      %v233 = vld [vmem:[%s220 + $0x28] sm:$0xff]
      %v234 = vld [vmem:[%s220 + $0x30] sm:$0xff]
      %v235 = vld [vmem:[%s220 + $0x38] sm:$0xff]
      %v236 = vld [vmem:[%s1] sm:$0xff]
      %v237 = vld [vmem:[%s1 + $0x8] sm:$0xff]
      %v238 = vld [vmem:[%s1 + $0x10] sm:$0xff]
      %v239 = vld [vmem:[%s1 + $0x18] sm:$0xff]
      %v240 = vld [vmem:[%s2] sm:$0x1]
      %v242 = vperm.slane %v240, 0
      %vm244 = vcmask 261120
      %v246 = vsel %vm244, %v228, 0
      %v249 = vsel %vm244, %v229, 0
      %v252 = vsel %vm244, %v230, 0
      %v255 = vsel %vm244, %v231, 0
      %v258 = vsel %vm244, %v232, 0
      %v261 = vsel %vm244, %v233, 0
      %v264 = vsel %vm244, %v234, 0
      %v267 = vsel %vm244, %v235, 0
      %269 = vmatpush.msra.mxu0 0.0
      %270 = vmatpush.msra.mxu0 0.0
      %271 = vmatpush.msra.mxu0 0.0
      %272 = vmatpush.msra.mxu0 0.0
      %273 = vmatpush.msra.mxu0 0.0
      %274 = vmatpush.msra.mxu0 0.0
      %275 = vmatpush.msra.mxu0 0.0
      %276 = vmatpush.msra.mxu0 0.0
      %277 = vmatpush.msra.mxu0 0.0
      %278 = vmatpush.msra.mxu0 0.0
      %279 = vmatpush.msra.mxu0 0.0
      %280 = vmatpush.msra.mxu0 0.0
      %281 = vmatpush.msra.mxu0 %v239
      %282 = vmatpush.msra.mxu0 %v238
      %283 = vmatpush.msra.mxu0 %v237
      %284 = vmatpush.msra.mxu0 %v236
      %285 = vmatmul.f32.gmra.mxu0 %v246
      %v286 = vpop.f32.mrf.mxu0
      %v287 = vadd.f32 %v242, %v286
      %288 = vmatmul.f32.gmra.mxu0 %v249
      %v289 = vpop.f32.mrf.mxu0
      %v290 = vadd.f32 %v242, %v289
      %291 = vmatmul.f32.gmra.mxu0 %v252
      %v292 = vpop.f32.mrf.mxu0
      %v293 = vadd.f32 %v242, %v292
      %294 = vmatmul.f32.gmra.mxu0 %v255
      %v295 = vpop.f32.mrf.mxu0
      %v296 = vadd.f32 %v242, %v295
      %297 = vmatmul.f32.gmra.mxu0 %v258
      %v298 = vpop.f32.mrf.mxu0
      %v299 = vadd.f32 %v242, %v298
      %300 = vmatmul.f32.gmra.mxu0 %v261
      %v301 = vpop.f32.mrf.mxu0
      %v302 = vadd.f32 %v242, %v301
      %303 = vmatmul.f32.gmra.mxu0 %v264
      %v304 = vpop.f32.mrf.mxu0
      %v305 = vadd.f32 %v242, %v304
      %306 = vmatmul.f32.gmra.mxu0 %v267
      %v307 = vpop.f32.mrf.mxu0
      %v308 = vadd.f32 %v242, %v307
      %309 = vdwg.mxu0
      %v310 = vmax.f32 %v287, 0.0
      %v311 = vmax.f32 %v290, 0.0
      %v312 = vmax.f32 %v293, 0.0
      %v313 = vmax.f32 %v296, 0.0
      %v314 = vmax.f32 %v299, 0.0
      %v315 = vmax.f32 %v302, 0.0
      %v316 = vmax.f32 %v305, 0.0
      %v317 = vmax.f32 %v308, 0.0
      %v318 = vld [vmem:[%s3] sm:$0xff]
      %v319 = vld [vmem:[%s3 + $0x8] sm:$0xff]
      %v320 = vld [vmem:[%s3 + $0x10] sm:$0xff]
      %v321 = vld [vmem:[%s3 + $0x18] sm:$0xff]
      %v322 = vld [vmem:[%s3 + $0x20] sm:$0xff]
      %v323 = vld [vmem:[%s3 + $0x28] sm:$0xff]
      %v324 = vld [vmem:[%s3 + $0x30] sm:$0xff]
      %v325 = vld [vmem:[%s3 + $0x38] sm:$0xff]
      %v326 = vld [vmem:[%s3 + $0x40] sm:$0xff]
      %v327 = vld [vmem:[%s3 + $0x48] sm:$0xff]
      %v328 = vld [vmem:[%s3 + $0x50] sm:$0xff]
      %v329 = vld [vmem:[%s3 + $0x58] sm:$0xff]
      %v330 = vld [vmem:[%s3 + $0x60] sm:$0xff]
      %v331 = vld [vmem:[%s3 + $0x68] sm:$0xff]
      %v332 = vld [vmem:[%s3 + $0x70] sm:$0xff]
      %v333 = vld [vmem:[%s3 + $0x78] sm:$0xff]
      %v334 = vld [vmem:[%s4] sm:$0x1]
      %v336 = vperm.slane %v334, 0
      %338 = vmatpush.msra.mxu0 %v333
      %339 = vmatpush.msra.mxu0 %v332
      %340 = vmatpush.msra.mxu0 %v331
      %341 = vmatpush.msra.mxu0 %v330
      %342 = vmatpush.msra.mxu0 %v329
      %343 = vmatpush.msra.mxu0 %v328
      %344 = vmatpush.msra.mxu0 %v327
      %345 = vmatpush.msra.mxu0 %v326
      %346 = vmatpush.msra.mxu0 %v325
      %347 = vmatpush.msra.mxu0 %v324
      %348 = vmatpush.msra.mxu0 %v323
      %349 = vmatpush.msra.mxu0 %v322
      %350 = vmatpush.msra.mxu0 %v321
      %351 = vmatpush.msra.mxu0 %v320
      %352 = vmatpush.msra.mxu0 %v319
      %353 = vmatpush.msra.mxu0 %v318
      %354 = vmatmul.f32.gmra.mxu0 %v310
      %v355 = vpop.f32.mrf.mxu0
      %v356 = vadd.f32 %v336, %v355
      %357 = vmatmul.f32.gmra.mxu0 %v311
      %v358 = vpop.f32.mrf.mxu0
      %v359 = vadd.f32 %v336, %v358
      %360 = vmatmul.f32.gmra.mxu0 %v312
      %v361 = vpop.f32.mrf.mxu0
      %v362 = vadd.f32 %v336, %v361
      %363 = vmatmul.f32.gmra.mxu0 %v313
      %v364 = vpop.f32.mrf.mxu0
      %v365 = vadd.f32 %v336, %v364
      %366 = vmatmul.f32.gmra.mxu0 %v314
      %v367 = vpop.f32.mrf.mxu0
      %v368 = vadd.f32 %v336, %v367
      %369 = vmatmul.f32.gmra.mxu0 %v315
      %v370 = vpop.f32.mrf.mxu0
      %v371 = vadd.f32 %v336, %v370
      %372 = vmatmul.f32.gmra.mxu0 %v316
      %v373 = vpop.f32.mrf.mxu0
      %v374 = vadd.f32 %v336, %v373
      %375 = vmatmul.f32.gmra.mxu0 %v317
      %v376 = vpop.f32.mrf.mxu0
      %v377 = vadd.f32 %v336, %v376
      %378 = vdwg.mxu0
      %v379 = vmax.f32 %v356, 0.0
      %v380 = vmax.f32 %v359, 0.0
      %v381 = vmax.f32 %v362, 0.0
      %v382 = vmax.f32 %v365, 0.0
      %v383 = vmax.f32 %v368, 0.0
      %v384 = vmax.f32 %v371, 0.0
      %v385 = vmax.f32 %v374, 0.0
      %v386 = vmax.f32 %v377, 0.0
      %387 = vst [vmem:[%s226] sm:$0xff] %v379
      %388 = vst [vmem:[%s226 + $0x8] sm:$0xff] %v380
      %389 = vst [vmem:[%s226 + $0x10] sm:$0xff] %v381
      %390 = vst [vmem:[%s226 + $0x18] sm:$0xff] %v382
      %391 = vst [vmem:[%s226 + $0x20] sm:$0xff] %v383
      %392 = vst [vmem:[%s226 + $0x28] sm:$0xff] %v384
      %393 = vst [vmem:[%s226 + $0x30] sm:$0xff] %v385
      %394 = vst [vmem:[%s226 + $0x38] sm:$0xff] %v386
      %s395 = smul.u32 8, %s16
      %p396 = scmp.lt.s32.totalorder %s395, 15
      %s397 = scalar_select %p396, %s395, 15
      %s398 = smul.addr %s397, 8
      %s399 = scalar_lea.vmem %s5, %s398
      // Predicated region
      $region41: #{dnn_forward.1} parent=39 // pred_check
        %p400 = pneg %p144
      $region42: #{dnn_forward.1} parent=39 // pred_check_branch
        %402 = sbr.rel (%p400) target = $region44
      $region43: #{dnn_forward.1} parent=39 // pred_region
        %s403 = smul.u32 8, %s16
      $region44: #{dnn_forward.1} parent=39 // pred_fallthru
        _
    $region40: #{dnn_forward.1} parent=5 // pred_fallthru
      _
    %p404 = scmp.le.s32.totalorder 2, %s11
    // Predicated region
    $region45: #{dnn_forward.1} parent=5 // pred_check
      %p405 = pneg %p404
    $region46: #{dnn_forward.1} parent=5 // pred_check_branch
      %407 = sbr.rel (%p405) target = $region48
    $region47: #{dnn_forward.1} parent=5 // pred_region
      %s408 = ssub.s32 %s11, 2
      // Predicated region
      $region49: #{dnn_forward.1} parent=47 // pred_check
        %p409 = pneg %p150
      $region50: #{dnn_forward.1} parent=47 // pred_check_branch
        %411 = sbr.rel (%p409) target = $region52
      $region51: #{dnn_forward.1} parent=47 // pred_region
        %s412 = smul.u32 8, %s17
        %p413 = scmp.lt.s32.totalorder %s412, 15
        %s414 = scalar_select %p413, %s412, 15
        %s415 = smul.addr %s414, 8
        %s416 = scalar_lea.vmem %s5, %s415
      $region52: #{dnn_forward.1} parent=47 // pred_fallthru
        _
    $region48: #{dnn_forward.1} parent=5 // pred_fallthru
      _
  $region6: #{dnn_forward.1} parent=0 // loop_footer
    %s15 = sadd.s32 1, %s11
  $region7: #{dnn_forward.1} parent=0 // loop_footer_branch
    %10 = sbr.rel target = $region3
  $region8: #{dnn_forward.1} parent=0 // loop_exit
    _

</llo_original>
